<compile_context>
chip_gen: v7x
topology: tpu7x:2x2x1
jax: 0.10.0
libtpu: 0.0.40
codegen_flags: <defaults>
</compile_context>

<pallas_src>
import jax
import jax.numpy as jnp
from jax.experimental import pallas as pl
from jax.experimental.pallas import tpu as pltpu


def _cdiv(a, b):
    return -(-a // b)


def _round_up(n, m):
    return ((n + m - 1) // m) * m


def _make_priornet_kernel(n_layers):
    """Kernel for an MLP with `n_layers` Linear layers.

    The first layer's weight is split into W_x / W_y so the x/y concat is
    fused into the kernel. Tanh follows every Linear except the last
    (matches the PyTorch nn.Sequential).

    Ref order: x, y, w_x, w_y, b_0, w_1..w_{n-1}, b_1..b_{n-1}, out.
    """
    n_rest = n_layers - 1

    def kernel(*refs):
        x_ref, y_ref, wx_ref, wy_ref, b0_ref = refs[:5]
        rest = refs[5:]
        w_refs = rest[:n_rest]
        b_refs = rest[n_rest:2 * n_rest]
        out_ref = rest[2 * n_rest]

        # Layer 0: fused concat  ->  x @ Wx + y @ Wy + b0
        h = (jnp.dot(x_ref[...], wx_ref[...], preferred_element_type=jnp.float32)
             + jnp.dot(y_ref[...], wy_ref[...], preferred_element_type=jnp.float32)
             + b0_ref[...])
        if n_layers > 1:
            h = jnp.tanh(h)

        # Remaining layers.
        for i in range(n_rest):
            h = jnp.dot(h, w_refs[i][...], preferred_element_type=jnp.float32)
            h = h + b_refs[i][...]          # (1, out) bias broadcasts over rows
            if i < n_rest - 1:
                h = jnp.tanh(h)

        out_ref[...] = h.astype(out_ref.dtype)

    return kernel


class PriorNetPallas:
    """JAX/Pallas re-implementation of the PyTorch PriorNet module."""

    # Upper bound on rows per grid step; the actual cap is derived from the
    # VMEM budget below so it adapts to the layer widths.
    MAX_BATCH_TILE = 8192
    # Tile budget kept under v7x's 64 MiB *physical* VMEM (v5e/v6e: 128 MiB).
    VMEM_BUDGET_BYTES = 40 * 1024 * 1024
    # Scoped-VMEM limit handed to Mosaic (safe on all three generations).
    VMEM_LIMIT_BYTES = 48 * 1024 * 1024

    def __init__(self, x_size, y_size, latent_size, dims, key):
        assert len(dims) >= 1
        self.x_size = x_size
        self.y_size = y_size
        self.latent_size = latent_size
        self.out_features = latent_size * 2

        full_dims = [x_size + y_size] + list(dims) + [self.out_features]
        self._layer_dims = list(zip(full_dims[:-1], full_dims[1:]))

        self.weights = []  # stored as (in, out), i.e. already transposed
        self.biases = []   # stored as (1, out)
        for din, dout in self._layer_dims:
            key, wk, bk = jax.random.split(key, 3)
            bound = 1.0 / float(din) ** 0.5
            w = jax.random.uniform(wk, (din, dout), jnp.float32, -bound, bound)
            b = jax.random.uniform(bk, (1, dout), jnp.float32, -bound, bound)
            self.weights.append(w)
            self.biases.append(b)
        self.n_layers = len(self.weights)

        # Kernel-side parameter layout: layer-0 weight pre-split into W_x/W_y
        # (fused concat). The last layer is left UNPADDED: the output block's
        # last dim equals the full array dim, which is a legal lane layout and
        # avoids writing 3/4 zero lanes to HBM.
        w0 = self.weights[0]
        self._wx = w0[:x_size, :]
        self._wy = w0[x_size:, :]
        self._b0 = self.biases[0]
        self._w_rest = list(self.weights[1:])
        self._b_rest = list(self.biases[1:])
        self._params = [self._wx, self._wy, self._b0] + self._w_rest + self._b_rest
        self._kernel = _make_priornet_kernel(self.n_layers)

        # VMEM-budgeted batch-tile cap:
        #   per-row f32 bytes ~ double-buffered x/y/out tiles + headroom for
        #   in-kernel intermediates (one live activation per layer output).
        per_row_bytes = 4 * (2 * (x_size + y_size + self.out_features)
                             + 2 * sum(dout for _, dout in self._layer_dims))
        tile_cap = max(8, (self.VMEM_BUDGET_BYTES // per_row_bytes) // 8 * 8)
        self._max_tile = min(self.MAX_BATCH_TILE, tile_cap)

    def __call__(self, x, y):
        x = x.astype(jnp.float32)
        y = y.astype(jnp.float32)
        batch = x.shape[0]

        # Batch-tile selection:
        #  * as large as the VMEM budget allows (amortizes ~0.35 us/grid-step),
        #  * at least 2 steps when batch >= 16 so both v7x TensorCores get work,
        #  * balanced tiles (batch=1025 no longer pads to 2048 rows of work),
        #  * no wrapper-side padding: ragged last block is masked by Pallas.
        n_steps = _cdiv(batch, self._max_tile)
        if batch >= 16:
            n_steps = max(n_steps, 2)
        tb = _round_up(_cdiv(batch, n_steps), 8)
        grid = (_cdiv(batch, tb),)

        in_specs = [
            pl.BlockSpec((tb, self.x_size), lambda i: (i, 0)),
            pl.BlockSpec((tb, self.y_size), lambda i: (i, 0)),
        ]
        for p in self._params:
            # Constant block index -> weights stay VMEM-resident across the
            # grid. `nd` bound as a default arg to avoid the late-binding bug.
            in_specs.append(
                pl.BlockSpec(p.shape, lambda i, nd=p.ndim: (0,) * nd))

        # Advisory cost estimate (useful HBM traffic only, no padding).
        flops = 2 * batch * sum(din * dout for din, dout in self._layer_dims)
        transcendentals = batch * sum(dout for _, dout in self._layer_dims[:-1])
        bytes_accessed = 4 * (
            batch * (self.x_size + self.y_size + self.out_features)
            + sum(int(w.size) + int(b.size)
                  for w, b in zip(self.weights, self.biases)))
        cost = pl.CostEstimate(flops=flops,
                               transcendentals=transcendentals,
                               bytes_accessed=bytes_accessed)

        predict = pl.pallas_call(
            self._kernel,
            out_shape=jax.ShapeDtypeStruct((batch, self.out_features),
                                           jnp.float32),
            grid=grid,
            in_specs=in_specs,
            out_specs=pl.BlockSpec((tb, self.out_features), lambda i: (i, 0)),
            compiler_params=pltpu.CompilerParams(
                dimension_semantics=("parallel",),
                vmem_limit_bytes=self.VMEM_LIMIT_BYTES),
            cost_estimate=cost,
        )(x, y, *self._params)

        # Single split of the (already unpadded) output — no batch slicing,
        # no lane-padding slicing.
        mu = predict[:, : self.latent_size]
        logvar = predict[:, self.latent_size:]
        return mu, logvar


def _reference_forward(net: PriorNetPallas, x, y):
    """Pure-JAX reference mirroring the PyTorch forward, for validation."""
    h = jnp.concatenate([x, y], axis=1).astype(jnp.float32)
    for i in range(net.n_layers):
        h = h @ net.weights[i] + net.biases[i]
        if i < net.n_layers - 1:
            h = jnp.tanh(h)
    return h[:, : net.latent_size], h[:, net.latent_size:]


if __name__ == "__main__":
    # Small shapes consistent with the module's forward:
    #   x: [batch, x_size], y: [batch, y_size]
    x_size, y_size = 32, 32
    latent_size = 16
    dims = [64]  # one hidden layer -> Linear+Tanh, then output Linear

    key = jax.random.PRNGKey(0)
    key, kp = jax.random.split(key)
    net = PriorNetPallas(x_size, y_size, latent_size, dims, kp)

    # Case 1: tiny batch (single grid step, exact blocks).
    batch = 8
    key, kx, ky = jax.random.split(key, 3)
    x = jax.random.normal(kx, (batch, x_size), jnp.float32)
    y = jax.random.normal(ky, (batch, y_size), jnp.float32)
    mu, logvar = net(x, y)
    jax.block_until_ready(mu)
    jax.block_until_ready(logvar)
    mu_ref, logvar_ref = _reference_forward(net, x, y)
    assert mu.shape == (batch, latent_size)
    assert logvar.shape == (batch, latent_size)
    assert jnp.allclose(mu, mu_ref, atol=1e-5, rtol=1e-5)
    assert jnp.allclose(logvar, logvar_ref, atol=1e-5, rtol=1e-5)

    # Case 2: odd batch -> 2 grid steps (megacore) with a ragged last block.
    batch2 = 20
    key, kx2, ky2 = jax.random.split(key, 3)
    x2 = jax.random.normal(kx2, (batch2, x_size), jnp.float32)
    y2 = jax.random.normal(ky2, (batch2, y_size), jnp.float32)
    mu2, logvar2 = net(x2, y2)
    jax.block_until_ready(mu2)
    jax.block_until_ready(logvar2)
    mu2_ref, logvar2_ref = _reference_forward(net, x2, y2)
    assert mu2.shape == (batch2, latent_size)
    assert logvar2.shape == (batch2, latent_size)
    assert jnp.allclose(mu2, mu2_ref, atol=1e-5, rtol=1e-5)
    assert jnp.allclose(logvar2, logvar2_ref, atol=1e-5, rtol=1e-5)

    print("KERNEL_OK")
</pallas_src>

<mosaic_0001>
module attributes {stable_mosaic.version = 11 : i64} {
  func.func @kernel(%arg0: i32, %arg1: memref<8x32xf32, #tpu.memory_space<vmem>>, %arg2: memref<8x32xf32, #tpu.memory_space<vmem>>, %arg3: memref<32x64xf32, #tpu.memory_space<vmem>>, %arg4: memref<32x64xf32, #tpu.memory_space<vmem>>, %arg5: memref<1x64xf32, #tpu.memory_space<vmem>>, %arg6: memref<64x32xf32, #tpu.memory_space<vmem>>, %arg7: memref<1x32xf32, #tpu.memory_space<vmem>>, %arg8: memref<8x32xf32, #tpu.memory_space<vmem>>) attributes {dimension_semantics = [#tpu.dimension_semantics<parallel>], iteration_bounds = array<i64: 1>, scalar_prefetch = 0 : i64, scratch_operands = 0 : i64, tpu.core_type = #tpu.core_type<tc>, window_params = [{transform_indices = @transform_0, window_bounds = array<i64: 8, 32>}, {transform_indices = @transform_1, window_bounds = array<i64: 8, 32>}, {pipeline_mode = #tpu.pipeline_mode<synchronous>, transform_indices = @transform_2, window_bounds = array<i64: 32, 64>}, {pipeline_mode = #tpu.pipeline_mode<synchronous>, transform_indices = @transform_3, window_bounds = array<i64: 32, 64>}, {pipeline_mode = #tpu.pipeline_mode<synchronous>, transform_indices = @transform_4, window_bounds = array<i64: 1, 64>}, {pipeline_mode = #tpu.pipeline_mode<synchronous>, transform_indices = @transform_5, window_bounds = array<i64: 64, 32>}, {pipeline_mode = #tpu.pipeline_mode<synchronous>, transform_indices = @transform_6, window_bounds = array<i64: 1, 32>}, {transform_indices = @transform_7, window_bounds = array<i64: 8, 32>}]} {
    %c0 = arith.constant 0 : index
    %c0_0 = arith.constant 0 : index
    %0 = vector.load %arg1[%c0, %c0_0] : memref<8x32xf32, #tpu.memory_space<vmem>>, vector<8x32xf32>
    %c0_1 = arith.constant 0 : index
    %c0_2 = arith.constant 0 : index
    %1 = vector.load %arg3[%c0_1, %c0_2] : memref<32x64xf32, #tpu.memory_space<vmem>>, vector<32x64xf32>
    %cst = arith.constant dense<0.000000e+00> : vector<8x64xf32>
    %2 = tpu.matmul %0, %1, %cst {dimension_numbers = #tpu.dot_dimension_numbers<[1], [0], [0], [1], [0, 0, 1, 1], [], []>} : vector<8x32xf32>, vector<32x64xf32>, vector<8x64xf32> -> vector<8x64xf32>
    %c0_3 = arith.constant 0 : index
    %c0_4 = arith.constant 0 : index
    %3 = vector.load %arg2[%c0_3, %c0_4] : memref<8x32xf32, #tpu.memory_space<vmem>>, vector<8x32xf32>
    %c0_5 = arith.constant 0 : index
    %c0_6 = arith.constant 0 : index
    %4 = vector.load %arg4[%c0_5, %c0_6] : memref<32x64xf32, #tpu.memory_space<vmem>>, vector<32x64xf32>
    %cst_7 = arith.constant dense<0.000000e+00> : vector<8x64xf32>
    %5 = tpu.matmul %3, %4, %cst_7 {dimension_numbers = #tpu.dot_dimension_numbers<[1], [0], [0], [1], [0, 0, 1, 1], [], []>} : vector<8x32xf32>, vector<32x64xf32>, vector<8x64xf32> -> vector<8x64xf32>
    %6 = arith.addf %2, %5 : vector<8x64xf32>
    %c0_8 = arith.constant 0 : index
    %c0_9 = arith.constant 0 : index
    %7 = vector.load %arg5[%c0_8, %c0_9] : memref<1x64xf32, #tpu.memory_space<vmem>>, vector<1x64xf32>
    %8 = vector.broadcast %7 : vector<1x64xf32> to vector<8x64xf32>
    %9 = arith.addf %6, %8 : vector<8x64xf32>
    %10 = math.tanh %9 : vector<8x64xf32>
    %c0_10 = arith.constant 0 : index
    %c0_11 = arith.constant 0 : index
    %11 = vector.load %arg6[%c0_10, %c0_11] : memref<64x32xf32, #tpu.memory_space<vmem>>, vector<64x32xf32>
    %cst_12 = arith.constant dense<0.000000e+00> : vector<8x32xf32>
    %12 = tpu.matmul %10, %11, %cst_12 {dimension_numbers = #tpu.dot_dimension_numbers<[1], [0], [0], [1], [0, 0, 1, 1], [], []>} : vector<8x64xf32>, vector<64x32xf32>, vector<8x32xf32> -> vector<8x32xf32>
    %c0_13 = arith.constant 0 : index
    %c0_14 = arith.constant 0 : index
    %13 = vector.load %arg7[%c0_13, %c0_14] : memref<1x32xf32, #tpu.memory_space<vmem>>, vector<1x32xf32>
    %14 = vector.broadcast %13 : vector<1x32xf32> to vector<8x32xf32>
    %15 = arith.addf %12, %14 : vector<8x32xf32>
    %c0_15 = arith.constant 0 : index
    %c0_16 = arith.constant 0 : index
    %16 = vector.load %arg8[%c0_15, %c0_16] : memref<8x32xf32, #tpu.memory_space<vmem>>, vector<8x32xf32>
    tpu.vector_store %arg8[%c0_15, %c0_16], %15 {strides = array<i32>} : memref<8x32xf32, #tpu.memory_space<vmem>>, vector<8x32xf32>,
    return
  }
  func.func @transform_0(%arg0: i32) -> (i32, i32) {
    %c0_i32 = arith.constant 0 : i32
    %c0_i32_0 = arith.constant 0 : i32
    return %arg0, %c0_i32 : i32, i32
  }
  func.func @transform_1(%arg0: i32) -> (i32, i32) {
    %c0_i32 = arith.constant 0 : i32
    %c0_i32_0 = arith.constant 0 : i32
    return %arg0, %c0_i32 : i32, i32
  }
  func.func @transform_2(%arg0: i32) -> (i32, i32) {
    %c0_i32 = arith.constant 0 : i32
    %c0_i32_0 = arith.constant 0 : i32
    %c0_i32_1 = arith.constant 0 : i32
    return %c0_i32, %c0_i32_0 : i32, i32
  }
  func.func @transform_3(%arg0: i32) -> (i32, i32) {
    %c0_i32 = arith.constant 0 : i32
    %c0_i32_0 = arith.constant 0 : i32
    %c0_i32_1 = arith.constant 0 : i32
    return %c0_i32, %c0_i32_0 : i32, i32
  }
  func.func @transform_4(%arg0: i32) -> (i32, i32) {
    %c0_i32 = arith.constant 0 : i32
    %c0_i32_0 = arith.constant 0 : i32
    %c0_i32_1 = arith.constant 0 : i32
    return %c0_i32, %c0_i32_0 : i32, i32
  }
  func.func @transform_5(%arg0: i32) -> (i32, i32) {
    %c0_i32 = arith.constant 0 : i32
    %c0_i32_0 = arith.constant 0 : i32
    %c0_i32_1 = arith.constant 0 : i32
    return %c0_i32, %c0_i32_0 : i32, i32
  }
  func.func @transform_6(%arg0: i32) -> (i32, i32) {
    %c0_i32 = arith.constant 0 : i32
    %c0_i32_0 = arith.constant 0 : i32
    %c0_i32_1 = arith.constant 0 : i32
    return %c0_i32, %c0_i32_0 : i32, i32
  }
  func.func @transform_7(%arg0: i32) -> (i32, i32) {
    %c0_i32 = arith.constant 0 : i32
    %c0_i32_0 = arith.constant 0 : i32
    return %arg0, %c0_i32 : i32, i32
  }
}

</mosaic_0001>

<llo_original>
// kernel: tpu_custom_call.1
$region0: #{tpu_custom_call.1}
  #allocation0 [shape = 'u32[]', space=smem, size = 0x4, offset = 0x4, fixed_abs, tag = 'smem constant byte address 0x4 - core index']
  #allocation1 [shape = 'u32[144,128]{1,0:T(1,128)}', space=vmem, size = 0x12000, scoped, tag = 'internal scratch']
  %s0 = inlined_call_operand.vmem [shape: f32[8,32], index: 0, kind: input, shape index: {}]
  %s1 = inlined_call_operand.vmem [shape: f32[8,32], index: 1, kind: input, shape index: {}]
  %s2 = inlined_call_operand.vmem [shape: f32[32,64], index: 2, kind: input, shape index: {}]
  %s3 = inlined_call_operand.vmem [shape: f32[32,64], index: 3, kind: input, shape index: {}]
  %s4 = inlined_call_operand.vmem [shape: f32[1,64], index: 4, kind: input, shape index: {}]
  %s5 = inlined_call_operand.vmem [shape: f32[64,32], index: 5, kind: input, shape index: {}]
  %s6 = inlined_call_operand.vmem [shape: f32[1,32], index: 6, kind: input, shape index: {}]
  %s7 = inlined_call_operand.hbm [shape: f32[8,32], index: 7, kind: output, shape index: {}]
  %s8 = sld [smem:[#allocation0]]
  $region38: #{tpu_custom_call.1} parent=0
    _
  %s10 = ssub.s32 1, %s8
  %s11 = scalar_select 0, %s10, %s8
  $region1: #{tpu_custom_call.1} parent=0
    #allocation2 [shape = 'u8[4096]{0}', space=vmem, size = 0x1000, scoped, tag = 'output window, operand 0, single buffered']
    #allocation3 [shape = 's32[1]{0}', space=sflag, size = 0x4, scoped, tag = 'scoped memory for tpu_custom_call.1']
    %12 = vsyncpa [#allocation3], 0
    // Predicated region
    $region2: #{tpu_custom_call.1} parent=1 // pred_check
      _
    $region3: #{tpu_custom_call.1} parent=1 // pred_check_branch
      %14 = sbr.rel (0) target = $region5
    $region4: #{tpu_custom_call.1} parent=1 // pred_region
      _
    $region5: #{tpu_custom_call.1} parent=1 // pred_fallthru
      _
    // Predicated region
    $region6: #{tpu_custom_call.1} parent=1 // pred_check
      _
    $region7: #{tpu_custom_call.1} parent=1 // pred_check_branch
      %16 = sbr.rel (0) target = $region9
    $region8: #{tpu_custom_call.1} parent=1 // pred_region
      _
    $region9: #{tpu_custom_call.1} parent=1 // pred_fallthru
      _
    // Predicated region
    $region10: #{tpu_custom_call.1} parent=1 // pred_check
      _
    $region11: #{tpu_custom_call.1} parent=1 // pred_check_branch
      %18 = sbr.rel (0) target = $region13
    $region12: #{tpu_custom_call.1} parent=1 // pred_region
      _
    $region13: #{tpu_custom_call.1} parent=1 // pred_fallthru
      _
    // Predicated region
    $region14: #{tpu_custom_call.1} parent=1 // pred_check
      _
    $region15: #{tpu_custom_call.1} parent=1 // pred_check_branch
      %20 = sbr.rel (0) target = $region17
    $region16: #{tpu_custom_call.1} parent=1 // pred_region
      _
    $region17: #{tpu_custom_call.1} parent=1 // pred_fallthru
      _
    // Predicated region
    $region18: #{tpu_custom_call.1} parent=1 // pred_check
      _
    $region19: #{tpu_custom_call.1} parent=1 // pred_check_branch
      %22 = sbr.rel (0) target = $region21
    $region20: #{tpu_custom_call.1} parent=1 // pred_region
      _
    $region21: #{tpu_custom_call.1} parent=1 // pred_fallthru
      _
    // Predicated region
    $region22: #{tpu_custom_call.1} parent=1 // pred_check
      _
    $region23: #{tpu_custom_call.1} parent=1 // pred_check_branch
      %24 = sbr.rel (0) target = $region25
    $region24: #{tpu_custom_call.1} parent=1 // pred_region
      _
    $region25: #{tpu_custom_call.1} parent=1 // pred_fallthru
      _
    // Predicated region
    $region26: #{tpu_custom_call.1} parent=1 // pred_check
      _
    $region27: #{tpu_custom_call.1} parent=1 // pred_check_branch
      %26 = sbr.rel (0) target = $region29
    $region28: #{tpu_custom_call.1} parent=1 // pred_region
      _
    $region29: #{tpu_custom_call.1} parent=1 // pred_fallthru
      _
    %v27 = vld [vmem:[%s0] sm:$0xff]
    %v28 = vld [vmem:[%s2] sm:$0xff]
    %v29 = vld [vmem:[%s2 + $0x8] sm:$0xff]
    %v30 = vld [vmem:[%s2 + $0x10] sm:$0xff]
    %v31 = vld [vmem:[%s2 + $0x18] sm:$0xff]
    %v32 = vld [vmem:[%s1] sm:$0xff]
    %v33 = vld [vmem:[%s3] sm:$0xff]
    %v34 = vld [vmem:[%s3 + $0x8] sm:$0xff]
    %v35 = vld [vmem:[%s3 + $0x10] sm:$0xff]
    %v36 = vld [vmem:[%s3 + $0x18] sm:$0xff]
    %vm37 = vcmask 261120
    %v39 = vsel %vm37, %v32, 0
    %41 = vmatprep.subr.mxu0 0.0
    %42 = vmatpush1.msra.mxu0 %v33
    %43 = vmatprep.subr.mxu0 0.0
    %44 = vmatpush1.msra.mxu0 %v34
    %45 = vmatprep.subr.mxu0 0.0
    %46 = vmatpush1.msra.mxu0 %v35
    %47 = vmatprep.subr.mxu0 0.0
    %48 = vmatpush1.msra.mxu0 %v36
    %49 = vmatprep.subr.mxu0 0.0
    %50 = vmatpush1.msra.mxu0 0.0
    %51 = vmatprep.subr.mxu0 0.0
    %52 = vmatpush1.msra.mxu0 0.0
    %53 = vmatprep.subr.mxu0 0.0
    %54 = vmatpush1.msra.mxu0 0.0
    %55 = vmatprep.subr.mxu0 0.0
    %56 = vmatpush1.msra.mxu0 0.0
    %57 = vmatprep.subr.mxu0 0.0
    %58 = vmatpush1.msra.mxu0 0.0
    %59 = vmatprep.subr.mxu0 0.0
    %60 = vmatpush1.msra.mxu0 0.0
    %61 = vmatprep.subr.mxu0 0.0
    %62 = vmatpush1.msra.mxu0 0.0
    %63 = vmatprep.subr.mxu0 0.0
    %64 = vmatpush1.msra.mxu0 0.0
    %65 = vmatprep.subr.mxu0 0.0
    %66 = vmatpush1.msra.mxu0 0.0
    %67 = vmatprep.subr.mxu0 0.0
    %68 = vmatpush1.msra.mxu0 0.0
    %69 = vmatprep.subr.mxu0 0.0
    %70 = vmatpush1.msra.mxu0 0.0
    %71 = vmatprep.subr.mxu0 0.0
    %72 = vmatpush1.msra.mxu0 0.0
    %73 = vmatprep.subr.mxu0 0.0
    %74 = vmatpush1.msra.mxu0 0.0
    %75 = vmatprep.subr.mxu0 0.0
    %76 = vmatpush1.msra.mxu0 0.0
    %77 = vmatprep.subr.mxu0 0.0
    %78 = vmatpush1.msra.mxu0 0.0
    %79 = vmatprep.subr.mxu0 0.0
    %80 = vmatpush1.msra.mxu0 0.0
    %81 = vmatprep.subr.mxu0 0.0
    %82 = vmatpush1.msra.mxu0 0.0
    %83 = vmatprep.subr.mxu0 0.0
    %84 = vmatpush1.msra.mxu0 0.0
    %85 = vmatprep.subr.mxu0 0.0
    %86 = vmatpush1.msra.mxu0 0.0
    %87 = vmatprep.subr.mxu0 0.0
    %88 = vmatpush1.msra.mxu0 0.0
    %89 = vmatprep.subr.mxu0 0.0
    %90 = vmatpush1.msra.mxu0 0.0
    %91 = vmatprep.subr.mxu0 0.0
    %92 = vmatpush1.msra.mxu0 0.0
    %93 = vmatprep.subr.mxu0 0.0
    %94 = vmatpush1.msra.mxu0 0.0
    %95 = vmatprep.subr.mxu0 0.0
    %96 = vmatpush1.msra.mxu0 0.0
    %97 = vmatprep.subr.mxu0 0.0
    %98 = vmatpush1.msra.mxu0 0.0
    %99 = vmatprep.subr.mxu0 0.0
    %100 = vmatpush1.msra.mxu0 0.0
    %101 = vmatprep.subr.mxu0 0.0
    %102 = vmatpush1.msra.mxu0 0.0
    %103 = vmatprep.subr.mxu0 0.0
    %104 = vmatpush1.msra.mxu0 0.0
    %105 = vmatprep.mubr.f32.mxu0 0.0
    %106 = vmatmul.mubr.f32.gmra.mrb[0].mxu0 %v39
    %v107 = vpop.f32.mrb[0].mxu0
    %v108 = vadd.f32 0.0, %v107
    %v109 = vpop.f32.mrb[0].mxu0
    %110 = vdwg.mxu0
    %v112 = vsel %vm37, %v27, 0
    %114 = vmatprep.subr.mxu0 0.0
    %115 = vmatpush1.msra.mxu0 %v28
    %116 = vmatprep.subr.mxu0 0.0
    %117 = vmatpush1.msra.mxu0 %v29
    %118 = vmatprep.subr.mxu0 0.0
    %119 = vmatpush1.msra.mxu0 %v30
    %120 = vmatprep.subr.mxu0 0.0
    %121 = vmatpush1.msra.mxu0 %v31
    %122 = vmatprep.subr.mxu0 0.0
    %123 = vmatpush1.msra.mxu0 0.0
    %124 = vmatprep.subr.mxu0 0.0
    %125 = vmatpush1.msra.mxu0 0.0
    %126 = vmatprep.subr.mxu0 0.0
    %127 = vmatpush1.msra.mxu0 0.0
    %128 = vmatprep.subr.mxu0 0.0
    %129 = vmatpush1.msra.mxu0 0.0
    %130 = vmatprep.subr.mxu0 0.0
    %131 = vmatpush1.msra.mxu0 0.0
    %132 = vmatprep.subr.mxu0 0.0
    %133 = vmatpush1.msra.mxu0 0.0
    %134 = vmatprep.subr.mxu0 0.0
    %135 = vmatpush1.msra.mxu0 0.0
    %136 = vmatprep.subr.mxu0 0.0
    %137 = vmatpush1.msra.mxu0 0.0
    %138 = vmatprep.subr.mxu0 0.0
    %139 = vmatpush1.msra.mxu0 0.0
    %140 = vmatprep.subr.mxu0 0.0
    %141 = vmatpush1.msra.mxu0 0.0
    %142 = vmatprep.subr.mxu0 0.0
    %143 = vmatpush1.msra.mxu0 0.0
    %144 = vmatprep.subr.mxu0 0.0
    %145 = vmatpush1.msra.mxu0 0.0
    %146 = vmatprep.subr.mxu0 0.0
    %147 = vmatpush1.msra.mxu0 0.0
    %148 = vmatprep.subr.mxu0 0.0
    %149 = vmatpush1.msra.mxu0 0.0
    %150 = vmatprep.subr.mxu0 0.0
    %151 = vmatpush1.msra.mxu0 0.0
    %152 = vmatprep.subr.mxu0 0.0
    %153 = vmatpush1.msra.mxu0 0.0
    %154 = vmatprep.subr.mxu0 0.0
    %155 = vmatpush1.msra.mxu0 0.0
    %156 = vmatprep.subr.mxu0 0.0
    %157 = vmatpush1.msra.mxu0 0.0
    %158 = vmatprep.subr.mxu0 0.0
    %159 = vmatpush1.msra.mxu0 0.0
    %160 = vmatprep.subr.mxu0 0.0
    %161 = vmatpush1.msra.mxu0 0.0
    %162 = vmatprep.subr.mxu0 0.0
    %163 = vmatpush1.msra.mxu0 0.0
    %164 = vmatprep.subr.mxu0 0.0
    %165 = vmatpush1.msra.mxu0 0.0
    %166 = vmatprep.subr.mxu0 0.0
    %167 = vmatpush1.msra.mxu0 0.0
    %168 = vmatprep.subr.mxu0 0.0
    %169 = vmatpush1.msra.mxu0 0.0
    %170 = vmatprep.subr.mxu0 0.0
    %171 = vmatpush1.msra.mxu0 0.0
    %172 = vmatprep.subr.mxu0 0.0
    %173 = vmatpush1.msra.mxu0 0.0
    %174 = vmatprep.subr.mxu0 0.0
    %175 = vmatpush1.msra.mxu0 0.0
    %176 = vmatprep.subr.mxu0 0.0
    %177 = vmatpush1.msra.mxu0 0.0
    %178 = vmatprep.mubr.f32.mxu0 0.0
    %179 = vmatmul.mubr.f32.gmra.mrb[0].mxu0 %v112
    %v180 = vpop.f32.mrb[0].mxu0
    %v181 = vadd.f32 %v108, %v180
    %v182 = vpop.f32.mrb[0].mxu0
    %183 = vdwg.mxu0
    %v184 = vld [vmem:[%s4] sm:$0x1]
    %v186 = vlaneseq
    %v187 = vshrl.u32 %v186, 7
    %v188 = vsub.s32 0, %v187
    %v189 = vrot.slane %v184, %v188
    %v191 = vadd.f32 %v181, %v189
    %v192 = vtanh.pop %v191
    %v193 = vld [vmem:[%s5] sm:$0xff]
    %v194 = vld [vmem:[%s5 + $0x8] sm:$0xff]
    %v195 = vld [vmem:[%s5 + $0x10] sm:$0xff]
    %v196 = vld [vmem:[%s5 + $0x18] sm:$0xff]
    %v197 = vld [vmem:[%s5 + $0x20] sm:$0xff]
    %v198 = vld [vmem:[%s5 + $0x28] sm:$0xff]
    %v199 = vld [vmem:[%s5 + $0x30] sm:$0xff]
    %v200 = vld [vmem:[%s5 + $0x38] sm:$0xff]
    %v201 = vld [vmem:[%s6] sm:$0x1]
    %v203 = vlaneseq
    %v204 = vshrl.u32 %v203, 7
    %v205 = vsub.s32 0, %v204
    %v206 = vrot.slane %v201, %v205
    %vm208 = vcmask 523264
    %v210 = vsel %vm208, %v192, 0
    %212 = vmatprep.subr.mxu0 0.0
    %213 = vmatpush1.msra.mxu0 %v193
    %214 = vmatprep.subr.mxu0 0.0
    %215 = vmatpush1.msra.mxu0 %v194
    %216 = vmatprep.subr.mxu0 0.0
    %217 = vmatpush1.msra.mxu0 %v195
    %218 = vmatprep.subr.mxu0 0.0
    %219 = vmatpush1.msra.mxu0 %v196
    %220 = vmatprep.subr.mxu0 0.0
    %221 = vmatpush1.msra.mxu0 %v197
    %222 = vmatprep.subr.mxu0 0.0
    %223 = vmatpush1.msra.mxu0 %v198
    %224 = vmatprep.subr.mxu0 0.0
    %225 = vmatpush1.msra.mxu0 %v199
    %226 = vmatprep.subr.mxu0 0.0
    %227 = vmatpush1.msra.mxu0 %v200
    %228 = vmatprep.subr.mxu0 0.0
    %229 = vmatpush1.msra.mxu0 0.0
    %230 = vmatprep.subr.mxu0 0.0
    %231 = vmatpush1.msra.mxu0 0.0
    %232 = vmatprep.subr.mxu0 0.0
    %233 = vmatpush1.msra.mxu0 0.0
    %234 = vmatprep.subr.mxu0 0.0
    %235 = vmatpush1.msra.mxu0 0.0
    %236 = vmatprep.subr.mxu0 0.0
    %237 = vmatpush1.msra.mxu0 0.0
    %238 = vmatprep.subr.mxu0 0.0
    %239 = vmatpush1.msra.mxu0 0.0
    %240 = vmatprep.subr.mxu0 0.0
    %241 = vmatpush1.msra.mxu0 0.0
    %242 = vmatprep.subr.mxu0 0.0
    %243 = vmatpush1.msra.mxu0 0.0
    %244 = vmatprep.subr.mxu0 0.0
    %245 = vmatpush1.msra.mxu0 0.0
    %246 = vmatprep.subr.mxu0 0.0
    %247 = vmatpush1.msra.mxu0 0.0
    %248 = vmatprep.subr.mxu0 0.0
    %249 = vmatpush1.msra.mxu0 0.0
    %250 = vmatprep.subr.mxu0 0.0
    %251 = vmatpush1.msra.mxu0 0.0
    %252 = vmatprep.subr.mxu0 0.0
    %253 = vmatpush1.msra.mxu0 0.0
    %254 = vmatprep.subr.mxu0 0.0
    %255 = vmatpush1.msra.mxu0 0.0
    %256 = vmatprep.subr.mxu0 0.0
    %257 = vmatpush1.msra.mxu0 0.0
    %258 = vmatprep.subr.mxu0 0.0
    %259 = vmatpush1.msra.mxu0 0.0
    %260 = vmatprep.subr.mxu0 0.0
    %261 = vmatpush1.msra.mxu0 0.0
    %262 = vmatprep.subr.mxu0 0.0
    %263 = vmatpush1.msra.mxu0 0.0
    %264 = vmatprep.subr.mxu0 0.0
    %265 = vmatpush1.msra.mxu0 0.0
    %266 = vmatprep.subr.mxu0 0.0
    %267 = vmatpush1.msra.mxu0 0.0
    %268 = vmatprep.subr.mxu0 0.0
    %269 = vmatpush1.msra.mxu0 0.0
    %270 = vmatprep.subr.mxu0 0.0
    %271 = vmatpush1.msra.mxu0 0.0
    %272 = vmatprep.subr.mxu0 0.0
    %273 = vmatpush1.msra.mxu0 0.0
    %274 = vmatprep.subr.mxu0 0.0
    %275 = vmatpush1.msra.mxu0 0.0
    %276 = vmatprep.mubr.f32.mxu0 0.0
    %277 = vmatmul.mubr.f32.gmra.mrb[0].mxu0 %v210
    %v278 = vpop.f32.mrb[0].mxu0
    %v279 = vadd.f32 %v206, %v278
    %v280 = vpop.f32.mrb[0].mxu0
    %281 = vdwg.mxu0
    %282 = vst.msk [vmem:[#allocation2] sm:$0xff] %vm37, %v279
    // Predicated region
    $region30: #{tpu_custom_call.1} parent=1 // pred_check
      _
    $region31: #{tpu_custom_call.1} parent=1 // pred_check_branch
      %284 = sbr.rel (0) target = $region33
    $region32: #{tpu_custom_call.1} parent=1 // pred_region
      %s286 = ssub.s32 128, 128
      %287 = vsyncadd [#allocation3], %s286
      %s289 = sshll.u32 [#allocation2], 4
      %s290 = int_to_ptr.vmem [resolvable:$true] %s289
      %292 = dma.vmem_to_hbm [thread:$0]  %s290, 128, %s7, [#allocation3]
    $region33: #{tpu_custom_call.1} parent=1 // pred_fallthru
      _
    // Predicated region
    $region34: #{tpu_custom_call.1} parent=1 // pred_check
      _
    $region35: #{tpu_custom_call.1} parent=1 // pred_check_branch
      %294 = sbr.rel (0) target = $region37
    $region36: #{tpu_custom_call.1} parent=1 // pred_region
      %295 = dma.done [#allocation3], 128
    $region37: #{tpu_custom_call.1} parent=1 // pred_fallthru
      _
    %296 = vsyncpa [#allocation3], 1

</llo_original>
